<compile_context>
chip_gen: v6e
topology: v6e:2x2x1
jax: 0.10.0
libtpu: 0.0.40
codegen_flags: <defaults>
</compile_context>

<pallas_src>
import jax
import jax.numpy as jnp
from jax.experimental import pallas as pl
from jax.experimental.pallas import tpu as pltpu


def in_value_kernel(s_ref, z_ref, h_ref, w1_ref, b1_ref,
                    w2s_ref, w2a_ref, b2_ref, act_ref, o_ref):
    # x = S_l @ Z_l + H_l                                  (N, K)  -- single MXU pass
    x = jnp.dot(s_ref[...], z_ref[...],
                preferred_element_type=jnp.float32) + h_ref[...]

    # Linear(num_features -> 1): pre = x @ W1^T + b1       (N, 1)
    # implemented as a lane (axis=1) reduction instead of a 1-wide matmul.
    pre = jnp.sum(x * w1_ref[...], axis=1, keepdims=True) + b1_ref[...]

    # sigmoid (exp on the EUP slot, exact divide keeps 1e-4 tolerance safe)
    scores = 1.0 / (1.0 + jnp.exp(-pre))                   # (N, 1)

    # Linear(2N -> 1) over concat([scores, action]) with W2 pre-split in the
    # wrapper, so the concat vanishes:
    contrib = scores * w2s_ref[...] + act_ref[...] * w2a_ref[...]       # (N, 1)
    o_ref[...] = jnp.sum(contrib, axis=0, keepdims=True) + b2_ref[...]  # (1, 1)


def in_value_forward(S_l, Z_l, H_l, action, w1, b1, w2, b2):
    """Pallas forward matching IN_value.forward.  Returns (1, 1)."""
    N = S_l.shape[0]
    K = Z_l.shape[1]
    f32 = jnp.float32

    S_l = S_l.astype(f32)
    Z_l = Z_l.astype(f32)
    H_l = H_l.astype(f32)

    w1_row = w1.reshape(1, K).astype(f32)                       # (1, K)
    b1_2d = b1.reshape(1, 1).astype(f32)                        # (1, 1)
    # Split linear2's weight into the scores half and the action half.
    w2_flat = w2.reshape(-1).astype(f32)                        # (2N,)
    w2_scores = w2_flat[:N].reshape(N, 1)                       # (N, 1)
    w2_action = w2_flat[N:].reshape(N, 1)                       # (N, 1)
    b2_2d = b2.reshape(1, 1).astype(f32)                        # (1, 1)
    act_col = action.reshape(N, 1).astype(f32)                  # (N, 1)

    vmem = pl.BlockSpec(memory_space=pltpu.MemorySpace.VMEM)
    return pl.pallas_call(
        in_value_kernel,
        out_shape=jax.ShapeDtypeStruct((1, 1), f32),
        in_specs=[vmem] * 9,
        out_specs=vmem,
    )(S_l, Z_l, H_l, w1_row, b1_2d, w2_scores, w2_action, b2_2d, act_col)


def in_value_reference(S_l, Z_l, H_l, action, w1, b1, w2, b2, N):
    """Pure-JAX mirror of the PyTorch forward (direct, un-restructured)."""
    action_r = action.reshape(1, -1)                    # (1, N)
    x = jnp.matmul(S_l, Z_l)
    x = x + H_l
    x = x.reshape(N, -1)
    x = jax.nn.sigmoid(x @ w1.T + b1)                   # (N, 1)
    x = x.reshape(-1)[None, :]                          # (1, N)  (squeeze + unsqueeze(0))
    x = jnp.concatenate([x, action_r], axis=1)          # (1, 2N)
    x = x @ w2.T + b2                                   # (1, 1)
    return x


if __name__ == "__main__":
    key = jax.random.PRNGKey(0)
    ks = jax.random.split(key, 8)

    N = 16            # number of assets / nodes
    num_features = 8  # K_l

    S_l = jax.random.normal(ks[0], (N, N), dtype=jnp.float32)
    Z_l = jax.random.normal(ks[1], (N, num_features), dtype=jnp.float32)
    H_l = jax.random.normal(ks[2], (N, num_features), dtype=jnp.float32)
    action = jax.random.normal(ks[3], (N,), dtype=jnp.float32)

    # nn.Linear(num_features, 1) and nn.Linear(2N, 1) parameters.
    w1 = jax.random.normal(ks[4], (1, num_features), dtype=jnp.float32) / jnp.sqrt(num_features)
    b1 = jax.random.normal(ks[5], (1,), dtype=jnp.float32) * 0.1
    w2 = jax.random.normal(ks[6], (1, 2 * N), dtype=jnp.float32) / jnp.sqrt(2.0 * N)
    b2 = jax.random.normal(ks[7], (1,), dtype=jnp.float32) * 0.1

    out = in_value_forward(S_l, Z_l, H_l, action, w1, b1, w2, b2)
    out = jax.block_until_ready(out)

    out_ref = in_value_reference(S_l, Z_l, H_l, action, w1, b1, w2, b2, N)

    assert out.shape == (1, 1), out.shape
    assert jnp.allclose(out, out_ref, atol=1e-4, rtol=1e-4), (out, out_ref)
    print("KERNEL_OK")
</pallas_src>

<mosaic_0001>
module attributes {stable_mosaic.version = 11 : i64} {
  func.func @in_value_kernel(%arg0: memref<16x16xf32, #tpu.memory_space<vmem>>, %arg1: memref<16x8xf32, #tpu.memory_space<vmem>>, %arg2: memref<16x8xf32, #tpu.memory_space<vmem>>, %arg3: memref<1x8xf32, #tpu.memory_space<vmem>>, %arg4: memref<1x1xf32, #tpu.memory_space<vmem>>, %arg5: memref<16x1xf32, #tpu.memory_space<vmem>>, %arg6: memref<16x1xf32, #tpu.memory_space<vmem>>, %arg7: memref<1x1xf32, #tpu.memory_space<vmem>>, %arg8: memref<16x1xf32, #tpu.memory_space<vmem>>, %arg9: memref<1x1xf32, #tpu.memory_space<vmem>>) attributes {dimension_semantics = [], scalar_prefetch = 0 : i64, scratch_operands = 0 : i64, tpu.core_type = #tpu.core_type<tc>} {
    %c0 = arith.constant 0 : index
    %c0_0 = arith.constant 0 : index
    %0 = vector.load %arg0[%c0, %c0_0] : memref<16x16xf32, #tpu.memory_space<vmem>>, vector<16x16xf32>
    %c0_1 = arith.constant 0 : index
    %c0_2 = arith.constant 0 : index
    %1 = vector.load %arg1[%c0_1, %c0_2] : memref<16x8xf32, #tpu.memory_space<vmem>>, vector<16x8xf32>
    %cst = arith.constant dense<0.000000e+00> : vector<16x8xf32>
    %2 = tpu.matmul %0, %1, %cst {dimension_numbers = #tpu.dot_dimension_numbers<[1], [0], [0], [1], [0, 0, 1, 1], [], []>} : vector<16x16xf32>, vector<16x8xf32>, vector<16x8xf32> -> vector<16x8xf32>
    %c0_3 = arith.constant 0 : index
    %c0_4 = arith.constant 0 : index
    %3 = vector.load %arg2[%c0_3, %c0_4] : memref<16x8xf32, #tpu.memory_space<vmem>>, vector<16x8xf32>
    %4 = arith.addf %2, %3 : vector<16x8xf32>
    %c0_5 = arith.constant 0 : index
    %c0_6 = arith.constant 0 : index
    %5 = vector.load %arg3[%c0_5, %c0_6] : memref<1x8xf32, #tpu.memory_space<vmem>>, vector<1x8xf32>
    %6 = vector.broadcast %5 : vector<1x8xf32> to vector<16x8xf32>
    %7 = arith.mulf %4, %6 : vector<16x8xf32>
    %cst_7 = arith.constant dense<0.000000e+00> : vector<16xf32>
    %8 = vector.multi_reduction <add>, %7, %cst_7 [1] : vector<16x8xf32> to vector<16xf32>
    %9 = vector.shape_cast %8 : vector<16xf32> to vector<16x1xf32>
    %c0_8 = arith.constant 0 : index
    %c0_9 = arith.constant 0 : index
    %10 = vector.load %arg4[%c0_8, %c0_9] : memref<1x1xf32, #tpu.memory_space<vmem>>, vector<1x1xf32>
    %11 = vector.broadcast %10 : vector<1x1xf32> to vector<16x1xf32>
    %12 = arith.addf %9, %11 : vector<16x1xf32>
    %cst_10 = arith.constant 0.000000e+00 : f32
    %13 = vector.broadcast %cst_10 : f32 to vector<16x1xf32>
    %14 = arith.subf %13, %12 : vector<16x1xf32>
    %15 = math.exp %14 : vector<16x1xf32>
    %cst_11 = arith.constant 1.000000e+00 : f32
    %16 = vector.broadcast %cst_11 : f32 to vector<16x1xf32>
    %17 = arith.addf %16, %15 : vector<16x1xf32>
    %cst_12 = arith.constant 1.000000e+00 : f32
    %18 = vector.broadcast %cst_12 : f32 to vector<16x1xf32>
    %19 = arith.divf %18, %17 : vector<16x1xf32>
    %c0_13 = arith.constant 0 : index
    %c0_14 = arith.constant 0 : index
    %20 = vector.load %arg5[%c0_13, %c0_14] : memref<16x1xf32, #tpu.memory_space<vmem>>, vector<16x1xf32>
    %21 = arith.mulf %19, %20 : vector<16x1xf32>
    %c0_15 = arith.constant 0 : index
    %c0_16 = arith.constant 0 : index
    %22 = vector.load %arg8[%c0_15, %c0_16] : memref<16x1xf32, #tpu.memory_space<vmem>>, vector<16x1xf32>
    %c0_17 = arith.constant 0 : index
    %c0_18 = arith.constant 0 : index
    %23 = vector.load %arg6[%c0_17, %c0_18] : memref<16x1xf32, #tpu.memory_space<vmem>>, vector<16x1xf32>
    %24 = arith.mulf %22, %23 : vector<16x1xf32>
    %25 = arith.addf %21, %24 : vector<16x1xf32>
    %cst_19 = arith.constant dense<0.000000e+00> : vector<1xf32>
    %26 = vector.multi_reduction <add>, %25, %cst_19 [0] : vector<16x1xf32> to vector<1xf32>
    %27 = vector.shape_cast %26 : vector<1xf32> to vector<1x1xf32>
    %c0_20 = arith.constant 0 : index
    %c0_21 = arith.constant 0 : index
    %28 = vector.load %arg7[%c0_20, %c0_21] : memref<1x1xf32, #tpu.memory_space<vmem>>, vector<1x1xf32>
    %29 = arith.addf %27, %28 : vector<1x1xf32>
    %c0_22 = arith.constant 0 : index
    %c0_23 = arith.constant 0 : index
    %30 = vector.load %arg9[%c0_22, %c0_23] : memref<1x1xf32, #tpu.memory_space<vmem>>, vector<1x1xf32>
    tpu.vector_store %arg9[%c0_22, %c0_23], %29 {strides = array<i32>} : memref<1x1xf32, #tpu.memory_space<vmem>>, vector<1x1xf32>,
    return
  }
}

</mosaic_0001>

<llo_original>
// kernel: tpu_custom_call.1
$region0: #{tpu_custom_call.1}
  #allocation0 [shape = 'u32[]', space=smem, size = 0x4, offset = 0x4, fixed_abs, tag = 'smem constant byte address 0x4 - core index']
  #allocation1 [shape = 'u32[144,128]{1,0:T(1,128)}', space=vmem, size = 0x12000, scoped, tag = 'internal scratch']
  #allocation2 [shape = 'f32[1,1]{1,0:T(1,128)S(1)}', space=vmem, size = 0x200, scoped, tag = 'scoped memory for tpu_custom_call.1']
  #allocation3 [shape = 'f32[1,1]{1,0:T(1,128)S(1)}', space=vmem, size = 0x200, scoped, tag = 'scoped memory for tpu_custom_call.1']
  %s0 = inlined_call_operand.vmem [shape: f32[16,16], index: 0, kind: input, shape index: {}]
  %s1 = inlined_call_operand.vmem [shape: f32[16,8], index: 1, kind: input, shape index: {}]
  %s2 = inlined_call_operand.vmem [shape: f32[16,8], index: 2, kind: input, shape index: {}]
  %s3 = inlined_call_operand.vmem [shape: f32[1,8], index: 3, kind: input, shape index: {}]
  %s4 = inlined_call_operand.<no memory space> [shape: f32[1,1], index: 4, kind: input, shape index: {}]
  %s5 = inlined_call_operand.vmem [shape: f32[16,1], index: 5, kind: input, shape index: {}]
  %s6 = inlined_call_operand.vmem [shape: f32[16,1], index: 6, kind: input, shape index: {}]
  %s7 = inlined_call_operand.<no memory space> [shape: f32[1,1], index: 7, kind: input, shape index: {}]
  %s8 = inlined_call_operand.vmem [shape: f32[16,1], index: 8, kind: input, shape index: {}]
  %s9 = inlined_call_operand.hbm [shape: f32[1,1], index: 9, kind: output, shape index: {}]
  %s10 = sld [smem:[#allocation0]]
  $region46: #{tpu_custom_call.1} parent=0
    _
  %s12 = ssub.s32 1, %s10
  %s13 = scalar_select 0, %s12, %s10
  %v14 = vstv %s4
  %15 = vst [vmem:[#allocation2] sm:$0x1] %v14
  %v16 = vstv %s7
  %17 = vst [vmem:[#allocation3] sm:$0x1] %v16
  $region1: #{tpu_custom_call.1} parent=0
    #allocation4 [shape = 'u8[512]{0}', space=vmem, size = 0x400, scoped, tag = 'output window, operand 0, single buffered']
    #allocation5 [shape = 's32[1]{0}', space=sflag, size = 0x4, scoped, tag = 'scoped memory for tpu_custom_call.1']
    %18 = vsyncpa [#allocation5], 0
    // Predicated region
    $region2: #{tpu_custom_call.1} parent=1 // pred_check
      _
    $region3: #{tpu_custom_call.1} parent=1 // pred_check_branch
      %20 = sbr.rel (0) target = $region5
    $region4: #{tpu_custom_call.1} parent=1 // pred_region
      _
    $region5: #{tpu_custom_call.1} parent=1 // pred_fallthru
      _
    // Predicated region
    $region6: #{tpu_custom_call.1} parent=1 // pred_check
      _
    $region7: #{tpu_custom_call.1} parent=1 // pred_check_branch
      %22 = sbr.rel (0) target = $region9
    $region8: #{tpu_custom_call.1} parent=1 // pred_region
      _
    $region9: #{tpu_custom_call.1} parent=1 // pred_fallthru
      _
    // Predicated region
    $region10: #{tpu_custom_call.1} parent=1 // pred_check
      _
    $region11: #{tpu_custom_call.1} parent=1 // pred_check_branch
      %24 = sbr.rel (0) target = $region13
    $region12: #{tpu_custom_call.1} parent=1 // pred_region
      _
    $region13: #{tpu_custom_call.1} parent=1 // pred_fallthru
      _
    // Predicated region
    $region14: #{tpu_custom_call.1} parent=1 // pred_check
      _
    $region15: #{tpu_custom_call.1} parent=1 // pred_check_branch
      %26 = sbr.rel (0) target = $region17
    $region16: #{tpu_custom_call.1} parent=1 // pred_region
      _
    $region17: #{tpu_custom_call.1} parent=1 // pred_fallthru
      _
    // Predicated region
    $region18: #{tpu_custom_call.1} parent=1 // pred_check
      _
    $region19: #{tpu_custom_call.1} parent=1 // pred_check_branch
      %28 = sbr.rel (0) target = $region21
    $region20: #{tpu_custom_call.1} parent=1 // pred_region
      _
    $region21: #{tpu_custom_call.1} parent=1 // pred_fallthru
      _
    // Predicated region
    $region22: #{tpu_custom_call.1} parent=1 // pred_check
      _
    $region23: #{tpu_custom_call.1} parent=1 // pred_check_branch
      %30 = sbr.rel (0) target = $region25
    $region24: #{tpu_custom_call.1} parent=1 // pred_region
      _
    $region25: #{tpu_custom_call.1} parent=1 // pred_fallthru
      _
    // Predicated region
    $region26: #{tpu_custom_call.1} parent=1 // pred_check
      _
    $region27: #{tpu_custom_call.1} parent=1 // pred_check_branch
      %32 = sbr.rel (0) target = $region29
    $region28: #{tpu_custom_call.1} parent=1 // pred_region
      _
    $region29: #{tpu_custom_call.1} parent=1 // pred_fallthru
      _
    // Predicated region
    $region30: #{tpu_custom_call.1} parent=1 // pred_check
      _
    $region31: #{tpu_custom_call.1} parent=1 // pred_check_branch
      %34 = sbr.rel (0) target = $region33
    $region32: #{tpu_custom_call.1} parent=1 // pred_region
      _
    $region33: #{tpu_custom_call.1} parent=1 // pred_fallthru
      _
    // Predicated region
    $region34: #{tpu_custom_call.1} parent=1 // pred_check
      _
    $region35: #{tpu_custom_call.1} parent=1 // pred_check_branch
      %36 = sbr.rel (0) target = $region37
    $region36: #{tpu_custom_call.1} parent=1 // pred_region
      _
    $region37: #{tpu_custom_call.1} parent=1 // pred_fallthru
      _
    %v37 = vld [vmem:[%s0] sm:$0xff]
    %v38 = vld [vmem:[%s0 + $0x8] sm:$0xff]
    %v39 = vld [vmem:[%s1] sm:$0xff]
    %v40 = vld [vmem:[%s1 + $0x8] sm:$0xff]
    %v41 = vld [vmem:[%s2] sm:$0xff]
    %v42 = vld [vmem:[%s2 + $0x8] sm:$0xff]
    %vm43 = vcmask 130048
    %v45 = vsel %vm43, %v37, 0
    %v48 = vsel %vm43, %v38, 0
    %50 = vmatprep.subr.mxu0 0.0
    %51 = vmatpush1.msra.mxu0 0.0
    %52 = vmatprep.subr.mxu0 0.0
    %53 = vmatpush1.msra.mxu0 0.0
    %54 = vmatprep.subr.mxu0 0.0
    %55 = vmatpush1.msra.mxu0 0.0
    %56 = vmatprep.subr.mxu0 0.0
    %57 = vmatpush1.msra.mxu0 0.0
    %58 = vmatprep.subr.mxu0 0.0
    %59 = vmatpush1.msra.mxu0 0.0
    %60 = vmatprep.subr.mxu0 0.0
    %61 = vmatpush1.msra.mxu0 0.0
    %62 = vmatprep.subr.mxu0 0.0
    %63 = vmatpush1.msra.mxu0 0.0
    %64 = vmatprep.subr.mxu0 0.0
    %65 = vmatpush1.msra.mxu0 0.0
    %66 = vmatprep.subr.mxu0 0.0
    %67 = vmatpush1.msra.mxu0 0.0
    %68 = vmatprep.subr.mxu0 0.0
    %69 = vmatpush1.msra.mxu0 0.0
    %70 = vmatprep.subr.mxu0 0.0
    %71 = vmatpush1.msra.mxu0 0.0
    %72 = vmatprep.subr.mxu0 0.0
    %73 = vmatpush1.msra.mxu0 0.0
    %74 = vmatprep.subr.mxu0 0.0
    %75 = vmatpush1.msra.mxu0 0.0
    %76 = vmatprep.subr.mxu0 0.0
    %77 = vmatpush1.msra.mxu0 0.0
    %78 = vmatprep.subr.mxu0 0.0
    %79 = vmatpush1.msra.mxu0 %v40
    %80 = vmatprep.subr.mxu0 0.0
    %81 = vmatpush1.msra.mxu0 %v39
    %82 = vmatprep.subr.mxu0 0.0
    %83 = vmatpush2.msra.mxu0 0.0
    %84 = vmatprep.subr.mxu0 0.0
    %85 = vmatpush2.msra.mxu0 0.0
    %86 = vmatprep.subr.mxu0 0.0
    %87 = vmatpush2.msra.mxu0 0.0
    %88 = vmatprep.subr.mxu0 0.0
    %89 = vmatpush2.msra.mxu0 0.0
    %90 = vmatprep.subr.mxu0 0.0
    %91 = vmatpush2.msra.mxu0 0.0
    %92 = vmatprep.subr.mxu0 0.0
    %93 = vmatpush2.msra.mxu0 0.0
    %94 = vmatprep.subr.mxu0 0.0
    %95 = vmatpush2.msra.mxu0 0.0
    %96 = vmatprep.subr.mxu0 0.0
    %97 = vmatpush2.msra.mxu0 0.0
    %98 = vmatprep.subr.mxu0 0.0
    %99 = vmatpush2.msra.mxu0 0.0
    %100 = vmatprep.subr.mxu0 0.0
    %101 = vmatpush2.msra.mxu0 0.0
    %102 = vmatprep.subr.mxu0 0.0
    %103 = vmatpush2.msra.mxu0 0.0
    %104 = vmatprep.subr.mxu0 0.0
    %105 = vmatpush2.msra.mxu0 0.0
    %106 = vmatprep.subr.mxu0 0.0
    %107 = vmatpush2.msra.mxu0 0.0
    %108 = vmatprep.subr.mxu0 0.0
    %109 = vmatpush2.msra.mxu0 0.0
    %110 = vmatprep.subr.mxu0 0.0
    %111 = vmatpush2.msra.mxu0 0.0
    %112 = vmatprep.subr.mxu0 0.0
    %113 = vmatpush2.msra.mxu0 0.0
    %114 = vmatprep.mubr.f32.mxu0 0.0
    %115 = vmatmul.mubr.f32.gmra.mxu0 %v45
    %v116 = vpop.f32.mrf.mxu0
    %v117 = vadd.f32 %v41, %v116
    %v118 = vpop.f32.mrf.mxu0
    %119 = vmatprep.mubr.f32.mxu0 0.0
    %120 = vmatmul.mubr.f32.gmra.mxu0 %v48
    %v121 = vpop.f32.mrf.mxu0
    %v122 = vadd.f32 %v42, %v121
    %v123 = vpop.f32.mrf.mxu0
    %124 = vdwg.mxu0
    %v125 = vld [vmem:[%s3] sm:$0x1]
    %v127 = vlaneseq
    %v128 = vshrl.u32 %v127, 7
    %v129 = vsub.s32 0, %v128
    %v130 = vrot.slane %v125, %v129
    %v132 = vmul.f32 %v117, %v130
    %v133 = vmul.f32 %v122, %v130
    %vm134 = vcmask 64512
    %v135 = vsel %vm134, %v132, 0.0
    %136 = vadd.xlane.f32.xlu0 %v135
    %v137 = vpop.xlane.xlu0 %136
    %v138 = vsel %vm134, %v133, 0.0
    %139 = vadd.xlane.f32.xlu0 %v138
    %v140 = vpop.xlane.xlu0 %139
    %v141 = vld [vmem:[#allocation2] sm:$0x1]
    %v143 = vlaneseq
    %v144 = vshrl.u32 %v143, 7
    %v145 = vsub.s32 0, %v144
    %v146 = vrot.slane %v141, %v145
    %v148 = vadd.f32 %v137, %v146
    %v149 = vadd.f32 %v140, %v146
    %v150 = vsub.f32 0.0, %v148
    %v151 = vsub.f32 0.0, %v149
    %v152 = vmul.f32 %v150, 1.442695
    %v153 = vpow.pop %v152
    %v154 = vmul.f32 %v151, 1.442695
    %v155 = vpow.pop %v154
    %v156 = vadd.f32 %v153, 1.0
    %v157 = vadd.f32 %v155, 1.0
    %v158 = vrcp.pop %v156
    %v159 = vmul.f32 1.0, %v158
    %v160 = vrcp.pop %v157
    %v161 = vmul.f32 1.0, %v160
    %v162 = vld [vmem:[%s5] sm:$0xff]
    %v163 = vld [vmem:[%s5 + $0x8] sm:$0xff]
    %v164 = vmul.f32 %v159, %v162
    %v165 = vmul.f32 %v161, %v163
    %v166 = vld [vmem:[%s8] sm:$0xff]
    %v167 = vld [vmem:[%s8 + $0x8] sm:$0xff]
    %v168 = vld [vmem:[%s6] sm:$0xff]
    %v169 = vld [vmem:[%s6 + $0x8] sm:$0xff]
    %v170 = vmul.f32 %v166, %v168
    %v171 = vmul.f32 %v167, %v169
    %v172 = vadd.f32 %v164, %v170
    %v173 = vadd.f32 %v165, %v171
    %vm174 = vcmask 7168
    %v175 = vsel %vm174, %v172, 0.0
    %v176 = vsel %vm174, %v173, 0.0
    %v177 = vadd.f32 %v175, %v176
    %v178 = vrot.slane %v177, 4
    %v179 = vadd.f32 %v177, %v178
    %v180 = vrot.slane %v179, 2
    %v181 = vadd.f32 %v179, %v180
    %v182 = vrot.slane %v181, 1
    %v183 = vadd.f32 %v181, %v182
    %v184 = vld [vmem:[#allocation3] sm:$0x1]
    %v185 = vadd.f32 %v183, %v184
    %vm186 = vcmask 0
    %187 = vst.msk [vmem:[#allocation4] sm:$0x1] %vm186, %v185
    // Predicated region
    $region38: #{tpu_custom_call.1} parent=1 // pred_check
      _
    $region39: #{tpu_custom_call.1} parent=1 // pred_check_branch
      %189 = sbr.rel (0) target = $region41
    $region40: #{tpu_custom_call.1} parent=1 // pred_region
      %s191 = ssub.s32 16, 16
      %192 = vsyncadd [#allocation5], %s191
      %s194 = sshll.u32 [#allocation4], 4
      %s195 = int_to_ptr.vmem [resolvable:$true] %s194
      %197 = dma.vmem_to_hbm [thread:$0]  %s195, 16, %s9, [#allocation5]
    $region41: #{tpu_custom_call.1} parent=1 // pred_fallthru
      _
    // Predicated region
    $region42: #{tpu_custom_call.1} parent=1 // pred_check
      _
    $region43: #{tpu_custom_call.1} parent=1 // pred_check_branch
      %199 = sbr.rel (0) target = $region45
    $region44: #{tpu_custom_call.1} parent=1 // pred_region
      %200 = dma.done [#allocation5], 16
    $region45: #{tpu_custom_call.1} parent=1 // pred_fallthru
      _
    %201 = vsyncpa [#allocation5], 1

</llo_original>
